<compile_context>
chip_gen: v7x
topology: tpu7x:2x2x1
jax: 0.10.0
libtpu: 0.0.40
codegen_flags: <defaults>
</compile_context>

<pallas_src>
import jax
import jax.numpy as jnp
from jax.experimental import pallas as pl
from jax.experimental.pallas import tpu as pltpu


_LANE_COLS = 512   # lane-dense last dim (multiple of 128)
_ROW_TILE = 256    # rows per block: 256 * 512 * 4 B = 512 KiB per f32 buffer


def _stats_kernel(x_ref, out_ref, sum_acc, sq_acc):
    """Pass 1: accumulate per-lane sum and sum(x*x) across all row tiles."""
    i = pl.program_id(0)

    @pl.when(i == 0)
    def _():
        sum_acc[...] = jnp.zeros_like(sum_acc)
        sq_acc[...] = jnp.zeros_like(sq_acc)

    x = x_ref[...].astype(jnp.float32)
    # sublane reduction only (keep the 128-lane axis dense); zero padding
    # contributes nothing to either accumulator.
    sum_acc[...] += jnp.sum(x, axis=0, keepdims=True)
    sq_acc[...] += jnp.sum(x * x, axis=0, keepdims=True)

    @pl.when(i == pl.num_programs(0) - 1)
    def _():
        out_ref[0:1, :] = sum_acc[...]
        out_ref[1:2, :] = sq_acc[...]


def _make_quant_kernel(levels: float):
    def kernel(scalars_ref, x_ref, out_ref):
        mean = scalars_ref[0]        # global mean
        scale_in = scalars_ref[1]    # 1 / (std * alpha)
        scale_out = scalars_ref[2]   # alpha / levels
        x = x_ref[...].astype(jnp.float32)
        c = jnp.clip((x - mean) * scale_in, -1.0, 1.0)
        q = jnp.round(jnp.abs(c) * levels) * jnp.sign(c)
        out_ref[...] = (q * scale_out).astype(out_ref.dtype)
    return kernel


def weight_quantize_fn(weight: jax.Array, wgt_alpha: jax.Array, w_bit: int) -> jax.Array:
    """Pallas forward pass of weight_quantize_fn(w_bit) applied to `weight`."""
    b = w_bit - 1
    levels = float(2 ** b - 1)
    orig_shape = weight.shape
    n = int(weight.size)

    # ---- lane-dense slab: flatten, zero-pad to (rows_pad, _LANE_COLS) ----
    cols = _LANE_COLS
    rows = pl.cdiv(n, cols)
    row_tile = min(_ROW_TILE, ((rows + 7) // 8) * 8)   # multiple of 8 sublanes
    rows_pad = pl.cdiv(rows, row_tile) * row_tile
    padded = rows_pad * cols
    flat = weight.reshape(-1)
    if padded != n:
        flat = jnp.pad(flat, (0, padded - n))
    slab = flat.reshape(rows_pad, cols)
    grid = (rows_pad // row_tile,)

    vmem_limit = 32 * 1024 * 1024
    cparams_reduce = pltpu.CompilerParams(
        dimension_semantics=("arbitrary",), vmem_limit_bytes=vmem_limit)
    cparams_map = pltpu.CompilerParams(
        dimension_semantics=("parallel",), vmem_limit_bytes=vmem_limit)

    # ---- pass 1: single HBM sweep -> per-lane [sum, sum(x^2)] ----
    stats = pl.pallas_call(
        _stats_kernel,
        out_shape=jax.ShapeDtypeStruct((2, cols), jnp.float32),
        grid=grid,
        in_specs=[pl.BlockSpec((row_tile, cols), lambda i: (i, 0))],
        out_specs=pl.BlockSpec((2, cols), lambda i: (0, 0)),
        scratch_shapes=[pltpu.VMEM((1, cols), jnp.float32),
                        pltpu.VMEM((1, cols), jnp.float32)],
        compiler_params=cparams_reduce,
    )(slab)

    # ---- tiny scalar finalize (zero padding is excluded via true n) ----
    n_f = jnp.float32(n)
    total = jnp.sum(stats[0])
    total_sq = jnp.sum(stats[1])
    mean = total / n_f
    var = jnp.maximum((total_sq - total * total / n_f) / (n_f - 1.0), 0.0)
    std = jnp.sqrt(var)
    alpha = jnp.asarray(wgt_alpha, jnp.float32)
    scalars = jnp.stack([mean, 1.0 / (std * alpha), alpha / levels])  # (3,) f32

    # ---- pass 2: tiled, pipelined elementwise quantize ----
    out = pl.pallas_call(
        _make_quant_kernel(levels),
        out_shape=jax.ShapeDtypeStruct((rows_pad, cols), weight.dtype),
        grid=grid,
        in_specs=[pl.BlockSpec(memory_space=pltpu.SMEM),              # [mean, scale_in, scale_out]
                  pl.BlockSpec((row_tile, cols), lambda i: (i, 0))],  # lane-dense weight tile
        out_specs=pl.BlockSpec((row_tile, cols), lambda i: (i, 0)),
        compiler_params=cparams_map,
    )(scalars, slab)

    return out.reshape(-1)[:n].reshape(orig_shape)


def _reference(weight, alpha, w_bit):
    # pure-JAX reference mirroring the PyTorch code
    b = w_bit - 1
    mean = jnp.mean(weight)
    std = jnp.std(weight, ddof=1)
    w = (weight - mean) / std
    c = jnp.clip(w / alpha, -1.0, 1.0)
    sign = jnp.sign(c)
    levels = 2.0 ** b - 1.0
    q = jnp.round(jnp.abs(c) * levels) / levels
    return q * sign * alpha


if __name__ == "__main__":
    key = jax.random.PRNGKey(0)
    # conv-style weight, OIHW: out_ch=8, in_ch=4, kh=kw=3
    weight = jax.random.normal(key, (8, 4, 3, 3), dtype=jnp.float32)

    w_bit = 4                              # module arg
    wgt_alpha = jnp.float32(3.0)           # Parameter init: torch.tensor(3.0)

    out = weight_quantize_fn(weight, wgt_alpha, w_bit)
    out = jax.block_until_ready(out)

    ref = _reference(weight, wgt_alpha, w_bit)
    assert out.shape == weight.shape and out.dtype == weight.dtype

    # Strict elementwise check, with an allowance for (at most a couple of)
    # single-level flips caused by f32 summation-order differences between the
    # one-sweep sum/sumsq statistics and the reference's two-pass mean/std.
    step = float(wgt_alpha) / (2.0 ** (w_bit - 1) - 1.0)
    diff = jnp.abs(out - ref)
    exact = diff <= 1e-5 + 1e-5 * jnp.abs(ref)
    near = diff <= step + 1e-4
    n_off = int(jnp.sum(~exact))
    assert bool(jnp.all(near)) and n_off <= 2, f"mismatch vs reference ({n_off} elements off)"

    print("KERNEL_OK")
</pallas_src>

<mosaic_0001>
module attributes {stable_mosaic.version = 11 : i64} {
  func.func @_stats_kernel(%arg0: i32, %arg1: memref<8x512xf32, #tpu.memory_space<vmem>>, %arg2: memref<2x512xf32, #tpu.memory_space<vmem>>, %arg3: memref<1x512xf32, #tpu.memory_space<vmem>>, %arg4: memref<1x512xf32, #tpu.memory_space<vmem>>) attributes {dimension_semantics = [#tpu.dimension_semantics<arbitrary>], iteration_bounds = array<i64: 1>, scalar_prefetch = 0 : i64, scratch_operands = 2 : i64, tpu.core_type = #tpu.core_type<tc>, window_params = [{transform_indices = @transform_0, window_bounds = array<i64: 8, 512>}, {pipeline_mode = #tpu.pipeline_mode<synchronous>, transform_indices = @transform_1, window_bounds = array<i64: 2, 512>}]} {
    %c0_i32 = arith.constant 0 : i32
    %0 = arith.cmpi eq, %arg0, %c0_i32 : i32
    %1 = arith.extui %0 : i1 to i32
    %c0_i32_0 = arith.constant 0 : i32
    %2 = arith.cmpi ne, %1, %c0_i32_0 : i32
    scf.if %2 {
      %cst_13 = arith.constant 0.000000e+00 : f32
      %18 = vector.broadcast %cst_13 : f32 to vector<1x512xf32>
      %c0_14 = arith.constant 0 : index
      %c0_15 = arith.constant 0 : index
      %19 = vector.load %arg3[%c0_14, %c0_15] : memref<1x512xf32, #tpu.memory_space<vmem>>, vector<1x512xf32>
      tpu.vector_store %arg3[%c0_14, %c0_15], %18 {strides = array<i32>} : memref<1x512xf32, #tpu.memory_space<vmem>>, vector<1x512xf32>,
      %cst_16 = arith.constant 0.000000e+00 : f32
      %20 = vector.broadcast %cst_16 : f32 to vector<1x512xf32>
      %c0_17 = arith.constant 0 : index
      %c0_18 = arith.constant 0 : index
      %21 = vector.load %arg4[%c0_17, %c0_18] : memref<1x512xf32, #tpu.memory_space<vmem>>, vector<1x512xf32>
      tpu.vector_store %arg4[%c0_17, %c0_18], %20 {strides = array<i32>} : memref<1x512xf32, #tpu.memory_space<vmem>>, vector<1x512xf32>,
    } else {
    }
    %c0 = arith.constant 0 : index
    %c0_1 = arith.constant 0 : index
    %3 = vector.load %arg1[%c0, %c0_1] : memref<8x512xf32, #tpu.memory_space<vmem>>, vector<8x512xf32>
    %c0_2 = arith.constant 0 : index
    %c0_3 = arith.constant 0 : index
    %4 = vector.load %arg3[%c0_2, %c0_3] : memref<1x512xf32, #tpu.memory_space<vmem>>, vector<1x512xf32>
    %cst = arith.constant dense<0.000000e+00> : vector<512xf32>
    %5 = vector.multi_reduction <add>, %3, %cst [0] : vector<8x512xf32> to vector<512xf32>
    %6 = vector.shape_cast %5 : vector<512xf32> to vector<1x512xf32>
    %7 = arith.addf %4, %6 : vector<1x512xf32>
    %c0_4 = arith.constant 0 : index
    %c0_5 = arith.constant 0 : index
    %8 = vector.load %arg3[%c0_4, %c0_5] : memref<1x512xf32, #tpu.memory_space<vmem>>, vector<1x512xf32>
    tpu.vector_store %arg3[%c0_4, %c0_5], %7 {strides = array<i32>} : memref<1x512xf32, #tpu.memory_space<vmem>>, vector<1x512xf32>,
    %c0_6 = arith.constant 0 : index
    %c0_7 = arith.constant 0 : index
    %9 = vector.load %arg4[%c0_6, %c0_7] : memref<1x512xf32, #tpu.memory_space<vmem>>, vector<1x512xf32>
    %10 = arith.mulf %3, %3 : vector<8x512xf32>
    %cst_8 = arith.constant dense<0.000000e+00> : vector<512xf32>
    %11 = vector.multi_reduction <add>, %10, %cst_8 [0] : vector<8x512xf32> to vector<512xf32>
    %12 = vector.shape_cast %11 : vector<512xf32> to vector<1x512xf32>
    %13 = arith.addf %9, %12 : vector<1x512xf32>
    %c0_9 = arith.constant 0 : index
    %c0_10 = arith.constant 0 : index
    %14 = vector.load %arg4[%c0_9, %c0_10] : memref<1x512xf32, #tpu.memory_space<vmem>>, vector<1x512xf32>
    tpu.vector_store %arg4[%c0_9, %c0_10], %13 {strides = array<i32>} : memref<1x512xf32, #tpu.memory_space<vmem>>, vector<1x512xf32>,
    %c0_i32_11 = arith.constant 0 : i32
    %15 = arith.cmpi eq, %arg0, %c0_i32_11 : i32
    %16 = arith.extui %15 : i1 to i32
    %c0_i32_12 = arith.constant 0 : i32
    %17 = arith.cmpi ne, %16, %c0_i32_12 : i32
    scf.if %17 {
      %c0_13 = arith.constant 0 : index
      %c0_14 = arith.constant 0 : index
      %18 = vector.load %arg3[%c0_13, %c0_14] : memref<1x512xf32, #tpu.memory_space<vmem>>, vector<1x512xf32>
      %c0_15 = arith.constant 0 : index
      %c0_16 = arith.constant 0 : index
      %19 = vector.load %arg2[%c0_15, %c0_16] : memref<2x512xf32, #tpu.memory_space<vmem>>, vector<1x512xf32>
      tpu.vector_store %arg2[%c0_15, %c0_16], %18 {strides = array<i32>} : memref<2x512xf32, #tpu.memory_space<vmem>>, vector<1x512xf32>,
      %c0_17 = arith.constant 0 : index
      %c0_18 = arith.constant 0 : index
      %20 = vector.load %arg4[%c0_17, %c0_18] : memref<1x512xf32, #tpu.memory_space<vmem>>, vector<1x512xf32>
      %c1 = arith.constant 1 : index
      %c0_19 = arith.constant 0 : index
      %21 = vector.load %arg2[%c1, %c0_19] : memref<2x512xf32, #tpu.memory_space<vmem>>, vector<1x512xf32>
      tpu.vector_store %arg2[%c1, %c0_19], %20 {strides = array<i32>} : memref<2x512xf32, #tpu.memory_space<vmem>>, vector<1x512xf32>,
    } else {
    }
    return
  }
  func.func @transform_0(%arg0: i32) -> (i32, i32) {
    %c0_i32 = arith.constant 0 : i32
    %c0_i32_0 = arith.constant 0 : i32
    return %arg0, %c0_i32 : i32, i32
  }
  func.func @transform_1(%arg0: i32) -> (i32, i32) {
    %c0_i32 = arith.constant 0 : i32
    %c0_i32_0 = arith.constant 0 : i32
    %c0_i32_1 = arith.constant 0 : i32
    return %c0_i32, %c0_i32_0 : i32, i32
  }
}

</mosaic_0001>

<llo_original>
// kernel: tpu_custom_call.1
$region0: #{tpu_custom_call.1}
  #allocation0 [shape = 'u32[]', space=smem, size = 0x4, offset = 0x4, fixed_abs, tag = 'smem constant byte address 0x4 - core index']
  #allocation1 [shape = 'u32[144,128]{1,0:T(1,128)}', space=vmem, size = 0x12000, scoped, tag = 'internal scratch']
  #allocation2 [shape = 'f32[1,512]{1,0:T(1,128)}', space=vmem, size = 0x800, scoped, tag = 'scratch operand']
  #allocation3 [shape = 'f32[1,512]{1,0:T(1,128)}', space=vmem, size = 0x800, scoped, tag = 'scratch operand']
  %s0 = inlined_call_operand.hbm [shape: f32[8,512], index: 0, kind: input, shape index: {}]
  %s1 = inlined_call_operand.hbm [shape: f32[2,512], index: 1, kind: output, shape index: {}]
  %s2 = sld [smem:[#allocation0]]
  $region26: #{tpu_custom_call.1} parent=0
    _
  %s4 = ssub.s32 1, %s2
  %s5 = scalar_select 0, %s4, %s2
  $region1: #{tpu_custom_call.1} parent=0
    #allocation4 [shape = 'u8[16384]{0}', space=vmem, size = 0x4000, scoped, tag = 'input window, operand 0, single buffered']
    #allocation5 [shape = 's32[1]{0}', space=sflag, size = 0x4, scoped, tag = 'scoped memory for tpu_custom_call.1']
    #allocation6 [shape = 's32[1]{0}', space=sflag, size = 0x4, scoped, tag = 'scoped memory for tpu_custom_call.1']
    #allocation7 [shape = 'u8[4096]{0}', space=vmem, size = 0x1000, scoped, tag = 'output window, operand 0, single buffered']
    %6 = vsyncpa [#allocation5], 0
    %7 = vsyncpa [#allocation6], 0
    // Predicated region
    $region2: #{tpu_custom_call.1} parent=1 // pred_check
      _
    $region3: #{tpu_custom_call.1} parent=1 // pred_check_branch
      %9 = sbr.rel (0) target = $region5
    $region4: #{tpu_custom_call.1} parent=1 // pred_region
      %s11 = ssub.s32 512, 512
      %12 = vsyncadd [#allocation5], %s11
      %s14 = sshll.u32 [#allocation4], 4
      %s15 = int_to_ptr.vmem [resolvable:$true] %s14
      %17 = dma.hbm_to_vmem [thread:$0]  %s0, 512, %s15, [#allocation5]
    $region5: #{tpu_custom_call.1} parent=1 // pred_fallthru
      _
    // Predicated region
    $region6: #{tpu_custom_call.1} parent=1 // pred_check
      _
    $region7: #{tpu_custom_call.1} parent=1 // pred_check_branch
      %19 = sbr.rel (0) target = $region9
    $region8: #{tpu_custom_call.1} parent=1 // pred_region
      %20 = dma.done [#allocation5], 512
    $region9: #{tpu_custom_call.1} parent=1 // pred_fallthru
      _
    %p21 = scmp.eq.s32.totalorder 0, 0
    // Predicated region
    $region10: #{tpu_custom_call.1} parent=1 // pred_check
      %p22 = pneg %p21
    $region11: #{tpu_custom_call.1} parent=1 // pred_check_branch
      %24 = sbr.rel (%p22) target = $region13
    $region12: #{tpu_custom_call.1} parent=1 // pred_region
      %v25 = vlaneseq
      %vm26 = vcmp.ge.s32.totalorder %v25, 0
      %vm27 = vcmp.lt.s32.totalorder %v25, 512
      %vm28 = vmand %vm26, %vm27
      %29 = vst.msk [vmem:[#allocation2] sm:$0xf] %vm28, 0.0
      %30 = vst.msk [vmem:[#allocation3] sm:$0xf] %vm28, 0.0
    $region13: #{tpu_custom_call.1} parent=1 // pred_fallthru
      _
    %v31 = vld [vmem:[#allocation4] sm:$0xff]
    %v32 = vld [vmem:[#allocation4 + $0x8] sm:$0xff]
    %v33 = vld [vmem:[#allocation4 + $0x10] sm:$0xff]
    %v34 = vld [vmem:[#allocation4 + $0x18] sm:$0xff]
    %v35 = vld [vmem:[#allocation2] sm:$0xf]
    %v36 = vrot.slane %v31, 4
    %v37 = vadd.f32 %v31, %v36
    %v38 = vrot.slane %v37, 2
    %v39 = vadd.f32 %v37, %v38
    %v40 = vrot.slane %v39, 1
    %v41 = vadd.f32 %v39, %v40
    %v42 = vrot.slane %v32, 4
    %v43 = vadd.f32 %v32, %v42
    %v44 = vrot.slane %v43, 2
    %v45 = vadd.f32 %v43, %v44
    %v46 = vrot.slane %v45, 1
    %v47 = vadd.f32 %v45, %v46
    %v48 = vrot.slane %v33, 4
    %v49 = vadd.f32 %v33, %v48
    %v50 = vrot.slane %v49, 2
    %v51 = vadd.f32 %v49, %v50
    %v52 = vrot.slane %v51, 1
    %v53 = vadd.f32 %v51, %v52
    %v54 = vrot.slane %v34, 4
    %v55 = vadd.f32 %v34, %v54
    %v56 = vrot.slane %v55, 2
    %v57 = vadd.f32 %v55, %v56
    %v58 = vrot.slane %v57, 1
    %v59 = vadd.f32 %v57, %v58
    %v64 = vcombine.low %v41, %v47
    %v65 = vcombine.low %v53, %v59
    %v67 = vunpack.c.l.s4 1966171168
    %v68 = vunpack.c.0.s8 %v67
    %v69 = vlaneseq
    %v70 = vshrl.u32 %v69, 7
    %v71 = vsub.s32 %v68, %v70
    %v72 = vrot.slane %v64, %v71
    %v74 = vunpack.c.l.s4 1966171168
    %v75 = vunpack.c.0.s8 %v74
    %v76 = vlaneseq
    %v77 = vshrl.u32 %v76, 7
    %v78 = vsub.s32 %v75, %v77
    %v79 = vrot.slane %v65, %v78
    %v80 = vcombine.low %v72, %v79
    %v82 = vunpack.c.l.s4 1966171168
    %v83 = vunpack.c.0.s8 %v82
    %v84 = vlaneseq
    %v85 = vshrl.u32 %v84, 7
    %v86 = vsub.s32 %v83, %v85
    %v87 = vrot.slane %v80, %v86
    %v89 = vadd.f32 %v35, %v87
    %v90 = vlaneseq
    %vm91 = vcmp.ge.s32.totalorder %v90, 0
    %vm92 = vcmp.lt.s32.totalorder %v90, 512
    %vm93 = vmand %vm91, %vm92
    %94 = vst.msk [vmem:[#allocation2] sm:$0xf] %vm93, %v89
    %v95 = vld [vmem:[#allocation3] sm:$0xf]
    %v96 = vmul.f32 %v31, %v31
    %v97 = vmul.f32 %v32, %v32
    %v98 = vmul.f32 %v33, %v33
    %v99 = vmul.f32 %v34, %v34
    %v100 = vrot.slane %v96, 4
    %v101 = vadd.f32 %v96, %v100
    %v102 = vrot.slane %v101, 2
    %v103 = vadd.f32 %v101, %v102
    %v104 = vrot.slane %v103, 1
    %v105 = vadd.f32 %v103, %v104
    %v106 = vrot.slane %v97, 4
    %v107 = vadd.f32 %v97, %v106
    %v108 = vrot.slane %v107, 2
    %v109 = vadd.f32 %v107, %v108
    %v110 = vrot.slane %v109, 1
    %v111 = vadd.f32 %v109, %v110
    %v112 = vrot.slane %v98, 4
    %v113 = vadd.f32 %v98, %v112
    %v114 = vrot.slane %v113, 2
    %v115 = vadd.f32 %v113, %v114
    %v116 = vrot.slane %v115, 1
    %v117 = vadd.f32 %v115, %v116
    %v118 = vrot.slane %v99, 4
    %v119 = vadd.f32 %v99, %v118
    %v120 = vrot.slane %v119, 2
    %v121 = vadd.f32 %v119, %v120
    %v122 = vrot.slane %v121, 1
    %v123 = vadd.f32 %v121, %v122
    %v128 = vcombine.low %v105, %v111
    %v129 = vcombine.low %v117, %v123
    %v131 = vunpack.c.l.s4 1966171168
    %v132 = vunpack.c.0.s8 %v131
    %v133 = vlaneseq
    %v134 = vshrl.u32 %v133, 7
    %v135 = vsub.s32 %v132, %v134
    %v136 = vrot.slane %v128, %v135
    %v138 = vunpack.c.l.s4 1966171168
    %v139 = vunpack.c.0.s8 %v138
    %v140 = vlaneseq
    %v141 = vshrl.u32 %v140, 7
    %v142 = vsub.s32 %v139, %v141
    %v143 = vrot.slane %v129, %v142
    %v144 = vcombine.low %v136, %v143
    %v146 = vunpack.c.l.s4 1966171168
    %v147 = vunpack.c.0.s8 %v146
    %v148 = vlaneseq
    %v149 = vshrl.u32 %v148, 7
    %v150 = vsub.s32 %v147, %v149
    %v151 = vrot.slane %v144, %v150
    %v153 = vadd.f32 %v95, %v151
    %154 = vst.msk [vmem:[#allocation3] sm:$0xf] %vm93, %v153
    // Predicated region
    $region14: #{tpu_custom_call.1} parent=1 // pred_check
      %p155 = pneg %p21
    $region15: #{tpu_custom_call.1} parent=1 // pred_check_branch
      %157 = sbr.rel (%p155) target = $region17
    $region16: #{tpu_custom_call.1} parent=1 // pred_region
      %v158 = vld [vmem:[#allocation2] sm:$0xf]
      %159 = vst.msk [vmem:[#allocation7] ss:$2 sm:$0xf] %vm93, %v158
      %v160 = vld [vmem:[#allocation3] sm:$0xf]
      %s161 = scalar_lea.vmem [#allocation7], 1
      %162 = vst.msk [vmem:[%s161] ss:$2 sm:$0xf] %vm93, %v160
    $region17: #{tpu_custom_call.1} parent=1 // pred_fallthru
      _
    // Predicated region
    $region18: #{tpu_custom_call.1} parent=1 // pred_check
      _
    $region19: #{tpu_custom_call.1} parent=1 // pred_check_branch
      %164 = sbr.rel (0) target = $region21
    $region20: #{tpu_custom_call.1} parent=1 // pred_region
      %s166 = ssub.s32 128, 128
      %167 = vsyncadd [#allocation6], %s166
      %s169 = sshll.u32 [#allocation7], 4
      %s170 = int_to_ptr.vmem [resolvable:$true] %s169
      %172 = dma.vmem_to_hbm [thread:$0]  %s170, 128, %s1, [#allocation6]
    $region21: #{tpu_custom_call.1} parent=1 // pred_fallthru
      _
    // Predicated region
    $region22: #{tpu_custom_call.1} parent=1 // pred_check
      _
    $region23: #{tpu_custom_call.1} parent=1 // pred_check_branch
      %174 = sbr.rel (0) target = $region25
    $region24: #{tpu_custom_call.1} parent=1 // pred_region
      %175 = dma.done [#allocation6], 128
    $region25: #{tpu_custom_call.1} parent=1 // pred_fallthru
      _
    %176 = vsyncpa [#allocation5], 1
    %177 = vsyncpa [#allocation6], 1

</llo_original>
